<compile_context>
chip_gen: v7x
topology: tpu7x:2x2x1
jax: 0.10.0
libtpu: 0.0.40
codegen_flags: <defaults>
</compile_context>

<pallas_src>
import jax
import jax.numpy as jnp
from jax.experimental import pallas as pl
from jax.experimental.pallas import tpu as pltpu


def attention_kernel(hf_ref, f_ref, w1_ref, w2_ref, b_ref, v_ref, out_ref):
    # hf_ref : (tb*L, H)  hiddens for this batch block, flattened batch-major
    # f_ref  : (tb, H)    features for this batch block
    # w1_ref : (H, H)     W1^T (x @ W layout)
    # w2_ref : (H, H)     W2^T
    # b_ref  : (1, H)     fused bias b1 + b2
    # v_ref  : (1, H)     V weight row (bV dropped: softmax is shift-invariant)
    # out_ref: (1, tb*L)  attention weights, lane-dense over (batch-in-block, seq)
    tbL, H = hf_ref.shape
    tb = f_ref.shape[0]
    L = tbL // tb

    # (1) One fused MXU call over all tb*L hidden rows.
    s1 = jnp.dot(hf_ref[...], w1_ref[...],
                 preferred_element_type=jnp.float32)                      # (tb*L, H)

    # (2) Feature projection for the whole block, fused (b1 + b2) bias.
    s2 = jnp.dot(f_ref[...], w2_ref[...],
                 preferred_element_type=jnp.float32) + b_ref[...]         # (tb, H)

    # (3) Sequence broadcast built from the SMALL s2 block (row b repeated L
    #     times, batch-major) so the big tensors never leave 2D layout.
    s2_rep = jnp.broadcast_to(s2[:, None, :], (tb, L, H)).reshape(tbL, H)  # (tb*L, H)

    # (4) score: pure 2D VPU add + EUP tanh.
    score = jnp.tanh(s1 + s2_rep)                                          # (tb*L, H)

    # (5) V projection (output dim 1) as VPU multiply + cross-lane (XLU) reduce.
    logits_col = jnp.sum(score * v_ref[...], axis=-1, keepdims=True)       # (tb*L, 1)

    # (6) Relayout only the tiny logits column so the softmax axis (seq, torch
    #     dim=1) sits on lanes.
    logits = logits_col.reshape(tb, L)                                     # (tb, L)

    # (7) Numerically-stable softmax over the sequence axis; exact division.
    m = jnp.max(logits, axis=-1, keepdims=True)                            # (tb, 1)
    e = jnp.exp(logits - m)                                                # (tb, L)
    denom = jnp.sum(e, axis=-1, keepdims=True)                             # (tb, 1)
    w = e / denom                                                          # (tb, L)

    # (8) Lane-dense store: one (1, tb*L) row per grid step.
    out_ref[...] = w.reshape(1, tbL).astype(out_ref.dtype)


def _pick_tb(B, L, H, budget_bytes):
    """Largest batch block that (a) divides B, (b) obeys the sublane rule
    (tb == B or tb % 8 == 0), and (c) keeps the double-buffered VMEM footprint
    under `budget_bytes` (sized for v7x's 64 MiB / 32 MiB-scoped VMEM)."""
    itemsize = 4  # f32

    def fits(tb):
        per_step = 2 * (tb * L * H + tb * H + tb * L) * itemsize   # double-buffered blocks
        resident = 2 * (2 * H * H + 2 * H) * itemsize              # weights/bias/V (conservative 2x)
        return per_step + resident <= budget_bytes

    if fits(B):
        return B
    for tb in range(B - 1, 0, -1):
        if B % tb == 0 and tb % 8 == 0 and fits(tb):
            return tb
    raise ValueError("No batch block size fits the VMEM budget; tile H as well.")


def attention_forward(hiddens, features, W1, b1, W2, b2, V, bV=None, *,
                      tb=None, vmem_budget_bytes=24 * 1024 * 1024):
    """hiddens: (B, L, H), features: (B, H); weights in torch nn.Linear layout."""
    B, L, H = hiddens.shape
    if tb is None:
        tb = _pick_tb(B, L, H, vmem_budget_bytes)
    assert B % tb == 0, "tb must divide B"
    # Sublane rule: the (tb, H), (tb*L, H) and (1, tb*L) blocks need their
    # second-to-last dim to be a multiple of 8 or equal to the full array dim.
    assert tb == B or tb % 8 == 0, "tb must be a multiple of 8 unless tb == B"
    num_blocks = B // tb

    h_flat = hiddens.reshape(B * L, H)          # batch-major flatten -> one big matmul
    w1_t = W1.T                                 # (H, H), x @ W layout
    w2_t = W2.T                                 # (H, H)
    b12 = (b1 + b2).reshape(1, H)               # fused bias
    v_row = V.reshape(1, H)                     # V as lane-dense row; bV dropped
    #                                             (softmax(x + c) == softmax(x))

    weights = pl.pallas_call(
        attention_kernel,
        out_shape=jax.ShapeDtypeStruct((num_blocks, tb * L), jnp.float32),
        grid_spec=pltpu.PrefetchScalarGridSpec(
            num_scalar_prefetch=0,
            grid=(num_blocks,),
            in_specs=[
                pl.BlockSpec((tb * L, H), lambda i: (i, 0)),   # hiddens (flattened)
                pl.BlockSpec((tb, H),     lambda i: (i, 0)),   # features
                pl.BlockSpec((H, H),      lambda i: (0, 0)),   # W1^T (grid-invariant)
                pl.BlockSpec((H, H),      lambda i: (0, 0)),   # W2^T (grid-invariant)
                pl.BlockSpec((1, H),      lambda i: (0, 0)),   # b1 + b2
                pl.BlockSpec((1, H),      lambda i: (0, 0)),   # V row
            ],
            # Lane-dense output: lane width tb*L per store (>=128 once tb*L >= 128).
            out_specs=pl.BlockSpec((1, tb * L), lambda i: (i, 0)),
        ),
        compiler_params=pltpu.CompilerParams(
            dimension_semantics=("parallel",),        # batch axis -> v7x 2-TC sharding
            vmem_limit_bytes=32 * 1024 * 1024,        # explicit, sized for v7x scoped VMEM
        ),
    )(h_flat, features, w1_t, w2_t, b12, v_row)

    # (num_blocks, tb*L) is batch-major -> (B, L); restore torch (B, L, 1).
    return weights.reshape(B, L)[..., None]


def reference_forward(hiddens, features, W1, b1, W2, b2, V, bV):
    # Pure-JAX mirror of the PyTorch module (weights in torch (out, in) layout).
    s = jnp.tanh(hiddens @ W1.T + b1 + (features[:, None, :] @ W2.T + b2))
    logits = s @ V.T + bV                       # (B, L, 1)
    return jax.nn.softmax(logits, axis=1)


if __name__ == "__main__":
    B, L, H = 2, 8, 32   # batch, sequence length, hidden_size

    key = jax.random.PRNGKey(0)
    kW1, kb1, kW2, kb2, kV, kbV, kh, kf = jax.random.split(key, 8)

    # Parameters in PyTorch nn.Linear layout: weight (out, in), bias (out,)
    W1 = jax.random.normal(kW1, (H, H), jnp.float32) * 0.1
    b1 = jax.random.normal(kb1, (H,),   jnp.float32) * 0.1
    W2 = jax.random.normal(kW2, (H, H), jnp.float32) * 0.1
    b2 = jax.random.normal(kb2, (H,),   jnp.float32) * 0.1
    V  = jax.random.normal(kV,  (1, H), jnp.float32) * 0.1
    bV = jax.random.normal(kbV, (1,),   jnp.float32) * 0.1

    hiddens  = jax.random.normal(kh, (B, L, H), jnp.float32)
    features = jax.random.normal(kf, (B, H),    jnp.float32)

    out = attention_forward(hiddens, features, W1, b1, W2, b2, V, bV)
    out = jax.block_until_ready(out)

    ref = reference_forward(hiddens, features, W1, b1, W2, b2, V, bV)
    assert out.shape == (B, L, 1)
    # Exact softmax division -> tight tolerances.
    assert jnp.allclose(out, ref, atol=1e-5, rtol=1e-5), float(jnp.max(jnp.abs(out - ref)))
    # softmax over dim=1 -> per-batch weights sum to 1
    assert jnp.allclose(jnp.sum(out, axis=1), 1.0, atol=1e-5)

    print("KERNEL_OK")
</pallas_src>

<mosaic_0001>
module attributes {stable_mosaic.version = 11 : i64} {
  func.func @attention_kernel(%arg0: i32, %arg1: memref<16x32xf32, #tpu.memory_space<vmem>>, %arg2: memref<2x32xf32, #tpu.memory_space<vmem>>, %arg3: memref<32x32xf32, #tpu.memory_space<vmem>>, %arg4: memref<32x32xf32, #tpu.memory_space<vmem>>, %arg5: memref<1x32xf32, #tpu.memory_space<vmem>>, %arg6: memref<1x32xf32, #tpu.memory_space<vmem>>, %arg7: memref<1x16xf32, #tpu.memory_space<vmem>>) attributes {dimension_semantics = [#tpu.dimension_semantics<parallel>], iteration_bounds = array<i64: 1>, scalar_prefetch = 0 : i64, scratch_operands = 0 : i64, tpu.core_type = #tpu.core_type<tc>, window_params = [{transform_indices = @transform_0, window_bounds = array<i64: 16, 32>}, {transform_indices = @transform_1, window_bounds = array<i64: 2, 32>}, {pipeline_mode = #tpu.pipeline_mode<synchronous>, transform_indices = @transform_2, window_bounds = array<i64: 32, 32>}, {pipeline_mode = #tpu.pipeline_mode<synchronous>, transform_indices = @transform_3, window_bounds = array<i64: 32, 32>}, {pipeline_mode = #tpu.pipeline_mode<synchronous>, transform_indices = @transform_4, window_bounds = array<i64: 1, 32>}, {pipeline_mode = #tpu.pipeline_mode<synchronous>, transform_indices = @transform_5, window_bounds = array<i64: 1, 32>}, {transform_indices = @transform_6, window_bounds = array<i64: 1, 16>}]} {
    %c0 = arith.constant 0 : index
    %c0_0 = arith.constant 0 : index
    %0 = vector.load %arg1[%c0, %c0_0] : memref<16x32xf32, #tpu.memory_space<vmem>>, vector<16x32xf32>
    %c0_1 = arith.constant 0 : index
    %c0_2 = arith.constant 0 : index
    %1 = vector.load %arg3[%c0_1, %c0_2] : memref<32x32xf32, #tpu.memory_space<vmem>>, vector<32x32xf32>
    %cst = arith.constant dense<0.000000e+00> : vector<16x32xf32>
    %2 = tpu.matmul %0, %1, %cst {dimension_numbers = #tpu.dot_dimension_numbers<[1], [0], [0], [1], [0, 0, 1, 1], [], []>} : vector<16x32xf32>, vector<32x32xf32>, vector<16x32xf32> -> vector<16x32xf32>
    %c0_3 = arith.constant 0 : index
    %c0_4 = arith.constant 0 : index
    %3 = vector.load %arg2[%c0_3, %c0_4] : memref<2x32xf32, #tpu.memory_space<vmem>>, vector<2x32xf32>
    %c0_5 = arith.constant 0 : index
    %c0_6 = arith.constant 0 : index
    %4 = vector.load %arg4[%c0_5, %c0_6] : memref<32x32xf32, #tpu.memory_space<vmem>>, vector<32x32xf32>
    %cst_7 = arith.constant dense<0.000000e+00> : vector<2x32xf32>
    %5 = tpu.matmul %3, %4, %cst_7 {dimension_numbers = #tpu.dot_dimension_numbers<[1], [0], [0], [1], [0, 0, 1, 1], [], []>} : vector<2x32xf32>, vector<32x32xf32>, vector<2x32xf32> -> vector<2x32xf32>
    %c0_8 = arith.constant 0 : index
    %c0_9 = arith.constant 0 : index
    %6 = vector.load %arg5[%c0_8, %c0_9] : memref<1x32xf32, #tpu.memory_space<vmem>>, vector<1x32xf32>
    %7 = vector.broadcast %6 : vector<1x32xf32> to vector<2x32xf32>
    %8 = arith.addf %5, %7 : vector<2x32xf32>
    %9 = vector.shape_cast %8 : vector<2x32xf32> to vector<2x1x32xf32>
    %10 = vector.shape_cast %9 : vector<2x1x32xf32> to vector<2x1x32xf32>
    %11 = vector.broadcast %10 : vector<2x1x32xf32> to vector<2x8x32xf32>
    %12 = vector.shape_cast %11 : vector<2x8x32xf32> to vector<16x32xf32>
    %13 = arith.addf %2, %12 : vector<16x32xf32>
    %14 = math.tanh %13 : vector<16x32xf32>
    %c0_10 = arith.constant 0 : index
    %c0_11 = arith.constant 0 : index
    %15 = vector.load %arg6[%c0_10, %c0_11] : memref<1x32xf32, #tpu.memory_space<vmem>>, vector<1x32xf32>
    %16 = vector.broadcast %15 : vector<1x32xf32> to vector<16x32xf32>
    %17 = arith.mulf %14, %16 : vector<16x32xf32>
    %cst_12 = arith.constant dense<0.000000e+00> : vector<16xf32>
    %18 = vector.multi_reduction <add>, %17, %cst_12 [1] : vector<16x32xf32> to vector<16xf32>
    %19 = vector.shape_cast %18 : vector<16xf32> to vector<16x1xf32>
    %20 = vector.shape_cast %19 : vector<16x1xf32> to vector<2x8xf32>
    %cst_13 = arith.constant dense<0xFF800000> : vector<2xf32>
    %21 = vector.multi_reduction <maximumf>, %20, %cst_13 [1] : vector<2x8xf32> to vector<2xf32>
    %22 = vector.shape_cast %21 : vector<2xf32> to vector<2x1xf32>
    %23 = vector.broadcast %22 : vector<2x1xf32> to vector<2x8xf32>
    %24 = arith.subf %20, %23 : vector<2x8xf32>
    %25 = math.exp %24 : vector<2x8xf32>
    %cst_14 = arith.constant dense<0.000000e+00> : vector<2xf32>
    %26 = vector.multi_reduction <add>, %25, %cst_14 [1] : vector<2x8xf32> to vector<2xf32>
    %27 = vector.shape_cast %26 : vector<2xf32> to vector<2x1xf32>
    %28 = vector.broadcast %27 : vector<2x1xf32> to vector<2x8xf32>
    %29 = arith.divf %25, %28 : vector<2x8xf32>
    %30 = vector.shape_cast %29 : vector<2x8xf32> to vector<1x16xf32>
    %c0_15 = arith.constant 0 : index
    %c0_16 = arith.constant 0 : index
    %31 = vector.load %arg7[%c0_15, %c0_16] : memref<1x16xf32, #tpu.memory_space<vmem>>, vector<1x16xf32>
    tpu.vector_store %arg7[%c0_15, %c0_16], %30 {strides = array<i32>} : memref<1x16xf32, #tpu.memory_space<vmem>>, vector<1x16xf32>,
    return
  }
  func.func @transform_0(%arg0: i32) -> (i32, i32) {
    %c0_i32 = arith.constant 0 : i32
    %c0_i32_0 = arith.constant 0 : i32
    return %arg0, %c0_i32 : i32, i32
  }
  func.func @transform_1(%arg0: i32) -> (i32, i32) {
    %c0_i32 = arith.constant 0 : i32
    %c0_i32_0 = arith.constant 0 : i32
    return %arg0, %c0_i32 : i32, i32
  }
  func.func @transform_2(%arg0: i32) -> (i32, i32) {
    %c0_i32 = arith.constant 0 : i32
    %c0_i32_0 = arith.constant 0 : i32
    %c0_i32_1 = arith.constant 0 : i32
    return %c0_i32, %c0_i32_0 : i32, i32
  }
  func.func @transform_3(%arg0: i32) -> (i32, i32) {
    %c0_i32 = arith.constant 0 : i32
    %c0_i32_0 = arith.constant 0 : i32
    %c0_i32_1 = arith.constant 0 : i32
    return %c0_i32, %c0_i32_0 : i32, i32
  }
  func.func @transform_4(%arg0: i32) -> (i32, i32) {
    %c0_i32 = arith.constant 0 : i32
    %c0_i32_0 = arith.constant 0 : i32
    %c0_i32_1 = arith.constant 0 : i32
    return %c0_i32, %c0_i32_0 : i32, i32
  }
  func.func @transform_5(%arg0: i32) -> (i32, i32) {
    %c0_i32 = arith.constant 0 : i32
    %c0_i32_0 = arith.constant 0 : i32
    %c0_i32_1 = arith.constant 0 : i32
    return %c0_i32, %c0_i32_0 : i32, i32
  }
  func.func @transform_6(%arg0: i32) -> (i32, i32) {
    %c0_i32 = arith.constant 0 : i32
    %c0_i32_0 = arith.constant 0 : i32
    return %arg0, %c0_i32 : i32, i32
  }
}

</mosaic_0001>

<llo_original>
// kernel: tpu_custom_call.1
$region0: #{tpu_custom_call.1}
  #allocation0 [shape = 'u32[]', space=smem, size = 0x4, offset = 0x4, fixed_abs, tag = 'smem constant byte address 0x4 - core index']
  #allocation1 [shape = 'u32[144,128]{1,0:T(1,128)}', space=vmem, size = 0x12000, scoped, tag = 'internal scratch']
  %s0 = inlined_call_operand.hbm [shape: f32[16,32], index: 0, kind: input, shape index: {}]
  %s1 = inlined_call_operand.vmem [shape: f32[2,32], index: 1, kind: input, shape index: {}]
  %s2 = inlined_call_operand.hbm [shape: f32[32,32], index: 2, kind: input, shape index: {}]
  %s3 = inlined_call_operand.hbm [shape: f32[32,32], index: 3, kind: input, shape index: {}]
  %s4 = inlined_call_operand.vmem [shape: f32[1,32], index: 4, kind: input, shape index: {}]
  %s5 = inlined_call_operand.vmem [shape: f32[1,32], index: 5, kind: input, shape index: {}]
  %s6 = inlined_call_operand.hbm [shape: f32[1,16], index: 6, kind: output, shape index: {}]
  %s7 = sld [smem:[#allocation0]]
  $region46: #{tpu_custom_call.1} parent=0
    _
  %s9 = ssub.s32 1, %s7
  %s10 = scalar_select 0, %s9, %s7
  $region1: #{tpu_custom_call.1} parent=0
    #allocation2 [shape = 'u8[8192]{0}', space=vmem, size = 0x2000, scoped, tag = 'input window, operand 0, single buffered']
    #allocation3 [shape = 's32[1]{0}', space=sflag, size = 0x4, scoped, tag = 'scoped memory for tpu_custom_call.1']
    #allocation4 [shape = 's32[1]{0}', space=sflag, size = 0x4, scoped, tag = 'scoped memory for tpu_custom_call.1']
    #allocation5 [shape = 'u8[16384]{0}', space=vmem, size = 0x4000, scoped, tag = 'input window, operand 2, single buffered']
    #allocation6 [shape = 's32[1]{0}', space=sflag, size = 0x4, scoped, tag = 'scoped memory for tpu_custom_call.1']
    #allocation7 [shape = 'u8[16384]{0}', space=vmem, size = 0x4000, scoped, tag = 'input window, operand 3, single buffered']
    #allocation8 [shape = 'u8[512]{0}', space=vmem, size = 0x400, scoped, tag = 'output window, operand 0, single buffered']
    %11 = vsyncpa [#allocation3], 0
    %12 = vsyncpa [#allocation6], 0
    %13 = vsyncpa [#allocation4], 0
    // Predicated region
    $region2: #{tpu_custom_call.1} parent=1 // pred_check
      _
    $region3: #{tpu_custom_call.1} parent=1 // pred_check_branch
      %15 = sbr.rel (0) target = $region5
    $region4: #{tpu_custom_call.1} parent=1 // pred_region
      %s17 = ssub.s32 256, 256
      %18 = vsyncadd [#allocation3], %s17
      %s19 = sshll.u32 [#allocation2], 4
      %s20 = int_to_ptr.vmem [resolvable:$true] %s19
      %25 = dma.hbm_to_vmem [thread:$0]  %s0, 256, %s20, [#allocation3], 128, 128, 8
    $region5: #{tpu_custom_call.1} parent=1 // pred_fallthru
      _
    // Predicated region
    $region6: #{tpu_custom_call.1} parent=1 // pred_check
      _
    $region7: #{tpu_custom_call.1} parent=1 // pred_check_branch
      %27 = sbr.rel (0) target = $region9
    $region8: #{tpu_custom_call.1} parent=1 // pred_region
      _
    $region9: #{tpu_custom_call.1} parent=1 // pred_fallthru
      _
    // Predicated region
    $region10: #{tpu_custom_call.1} parent=1 // pred_check
      _
    $region11: #{tpu_custom_call.1} parent=1 // pred_check_branch
      %29 = sbr.rel (0) target = $region13
    $region12: #{tpu_custom_call.1} parent=1 // pred_region
      %s31 = ssub.s32 512, 512
      %32 = vsyncadd [#allocation6], %s31
      %s33 = sshll.u32 [#allocation5], 4
      %s34 = int_to_ptr.vmem [resolvable:$true] %s33
      %39 = dma.hbm_to_vmem [thread:$0]  %s2, 512, %s34, [#allocation6], 128, 128, 8
    $region13: #{tpu_custom_call.1} parent=1 // pred_fallthru
      _
    // Predicated region
    $region14: #{tpu_custom_call.1} parent=1 // pred_check
      _
    $region15: #{tpu_custom_call.1} parent=1 // pred_check_branch
      %41 = sbr.rel (0) target = $region17
    $region16: #{tpu_custom_call.1} parent=1 // pred_region
      %s43 = ssub.s32 512, 512
      %44 = vsyncadd [#allocation6], %s43
      %s45 = sshll.u32 [#allocation7], 4
      %s46 = int_to_ptr.vmem [resolvable:$true] %s45
      %51 = dma.hbm_to_vmem [thread:$0]  %s3, 512, %s46, [#allocation6], 128, 128, 8
    $region17: #{tpu_custom_call.1} parent=1 // pred_fallthru
      _
    // Predicated region
    $region18: #{tpu_custom_call.1} parent=1 // pred_check
      _
    $region19: #{tpu_custom_call.1} parent=1 // pred_check_branch
      %53 = sbr.rel (0) target = $region21
    $region20: #{tpu_custom_call.1} parent=1 // pred_region
      _
    $region21: #{tpu_custom_call.1} parent=1 // pred_fallthru
      _
    // Predicated region
    $region22: #{tpu_custom_call.1} parent=1 // pred_check
      _
    $region23: #{tpu_custom_call.1} parent=1 // pred_check_branch
      %55 = sbr.rel (0) target = $region25
    $region24: #{tpu_custom_call.1} parent=1 // pred_region
      _
    $region25: #{tpu_custom_call.1} parent=1 // pred_fallthru
      _
    // Predicated region
    $region26: #{tpu_custom_call.1} parent=1 // pred_check
      _
    $region27: #{tpu_custom_call.1} parent=1 // pred_check_branch
      %57 = sbr.rel (0) target = $region29
    $region28: #{tpu_custom_call.1} parent=1 // pred_region
      %58 = dma.done [#allocation3], 256
    $region29: #{tpu_custom_call.1} parent=1 // pred_fallthru
      _
    // Predicated region
    $region30: #{tpu_custom_call.1} parent=1 // pred_check
      _
    $region31: #{tpu_custom_call.1} parent=1 // pred_check_branch
      %60 = sbr.rel (0) target = $region33
    $region32: #{tpu_custom_call.1} parent=1 // pred_region
      %61 = dma.done [#allocation6], 512
    $region33: #{tpu_custom_call.1} parent=1 // pred_fallthru
      _
    // Predicated region
    $region34: #{tpu_custom_call.1} parent=1 // pred_check
      _
    $region35: #{tpu_custom_call.1} parent=1 // pred_check_branch
      %63 = sbr.rel (0) target = $region37
    $region36: #{tpu_custom_call.1} parent=1 // pred_region
      %64 = dma.done [#allocation6], 512
    $region37: #{tpu_custom_call.1} parent=1 // pred_fallthru
      _
    %v65 = vld [vmem:[#allocation2] sm:$0xff]
    %v66 = vld [vmem:[#allocation2 + $0x8] sm:$0xff]
    %v67 = vld [vmem:[#allocation5] sm:$0xff]
    %v68 = vld [vmem:[#allocation5 + $0x8] sm:$0xff]
    %v69 = vld [vmem:[#allocation5 + $0x10] sm:$0xff]
    %v70 = vld [vmem:[#allocation5 + $0x18] sm:$0xff]
    %v71 = vld [vmem:[%s1] sm:$0x3]
    %v72 = vld [vmem:[#allocation7] sm:$0xff]
    %v73 = vld [vmem:[#allocation7 + $0x8] sm:$0xff]
    %v74 = vld [vmem:[#allocation7 + $0x10] sm:$0xff]
    %v75 = vld [vmem:[#allocation7 + $0x18] sm:$0xff]
    %v76 = vld [vmem:[%s4] sm:$0x1]
    %v78 = vlaneseq
    %v79 = vshrl.u32 %v78, 7
    %v80 = vsub.s32 0, %v79
    %v81 = vrot.slane %v76, %v80
    %vm83 = vcmask 261120
    %v85 = vsel %vm83, %v71, 0
    %87 = vmatprep.subr.mxu0 0.0
    %88 = vmatpush1.msra.mxu0 %v72
    %89 = vmatprep.subr.mxu0 0.0
    %90 = vmatpush1.msra.mxu0 %v73
    %91 = vmatprep.subr.mxu0 0.0
    %92 = vmatpush1.msra.mxu0 %v74
    %93 = vmatprep.subr.mxu0 0.0
    %94 = vmatpush1.msra.mxu0 %v75
    %95 = vmatprep.subr.mxu0 0.0
    %96 = vmatpush1.msra.mxu0 0.0
    %97 = vmatprep.subr.mxu0 0.0
    %98 = vmatpush1.msra.mxu0 0.0
    %99 = vmatprep.subr.mxu0 0.0
    %100 = vmatpush1.msra.mxu0 0.0
    %101 = vmatprep.subr.mxu0 0.0
    %102 = vmatpush1.msra.mxu0 0.0
    %103 = vmatprep.subr.mxu0 0.0
    %104 = vmatpush1.msra.mxu0 0.0
    %105 = vmatprep.subr.mxu0 0.0
    %106 = vmatpush1.msra.mxu0 0.0
    %107 = vmatprep.subr.mxu0 0.0
    %108 = vmatpush1.msra.mxu0 0.0
    %109 = vmatprep.subr.mxu0 0.0
    %110 = vmatpush1.msra.mxu0 0.0
    %111 = vmatprep.subr.mxu0 0.0
    %112 = vmatpush1.msra.mxu0 0.0
    %113 = vmatprep.subr.mxu0 0.0
    %114 = vmatpush1.msra.mxu0 0.0
    %115 = vmatprep.subr.mxu0 0.0
    %116 = vmatpush1.msra.mxu0 0.0
    %117 = vmatprep.subr.mxu0 0.0
    %118 = vmatpush1.msra.mxu0 0.0
    %119 = vmatprep.subr.mxu0 0.0
    %120 = vmatpush1.msra.mxu0 0.0
    %121 = vmatprep.subr.mxu0 0.0
    %122 = vmatpush1.msra.mxu0 0.0
    %123 = vmatprep.subr.mxu0 0.0
    %124 = vmatpush1.msra.mxu0 0.0
    %125 = vmatprep.subr.mxu0 0.0
    %126 = vmatpush1.msra.mxu0 0.0
    %127 = vmatprep.subr.mxu0 0.0
    %128 = vmatpush1.msra.mxu0 0.0
    %129 = vmatprep.subr.mxu0 0.0
    %130 = vmatpush1.msra.mxu0 0.0
    %131 = vmatprep.subr.mxu0 0.0
    %132 = vmatpush1.msra.mxu0 0.0
    %133 = vmatprep.subr.mxu0 0.0
    %134 = vmatpush1.msra.mxu0 0.0
    %135 = vmatprep.subr.mxu0 0.0
    %136 = vmatpush1.msra.mxu0 0.0
    %137 = vmatprep.subr.mxu0 0.0
    %138 = vmatpush1.msra.mxu0 0.0
    %139 = vmatprep.subr.mxu0 0.0
    %140 = vmatpush1.msra.mxu0 0.0
    %141 = vmatprep.subr.mxu0 0.0
    %142 = vmatpush1.msra.mxu0 0.0
    %143 = vmatprep.subr.mxu0 0.0
    %144 = vmatpush1.msra.mxu0 0.0
    %145 = vmatprep.subr.mxu0 0.0
    %146 = vmatpush1.msra.mxu0 0.0
    %147 = vmatprep.subr.mxu0 0.0
    %148 = vmatpush1.msra.mxu0 0.0
    %149 = vmatprep.subr.mxu0 0.0
    %150 = vmatpush1.msra.mxu0 0.0
    %151 = vmatprep.mubr.f32.mxu0 0.0
    %152 = vmatmul.mubr.f32.gmra.mrb[0].mxu0 %v85
    %v153 = vpop.f32.mrb[0].mxu0
    %v154 = vadd.f32 %v81, %v153
    %v155 = vpop.f32.mrb[0].mxu0
    %156 = vdwg.mxu0
    %v159 = vunpack.c.l.s4 1966171168
    %v160 = vunpack.c.0.s8 %v159
    %v161 = vlaneseq
    %v162 = vshrl.u32 %v161, 7
    %v163 = vsub.s32 %v160, %v162
    %v164 = vrot.slane %v154, %v163
    %v165 = vcombine.high %v164, %v164
    %v167 = vunpack.c.l.s4 1966171168
    %v168 = vunpack.c.0.s8 %v167
    %v169 = vlaneseq
    %v170 = vshrl.u32 %v169, 7
    %v171 = vsub.s32 %v168, %v170
    %v172 = vrot.slane %v164, %v171
    %v174 = vunpack.c.l.s4 1966171168
    %v175 = vunpack.c.0.s8 %v174
    %v176 = vlaneseq
    %v177 = vshrl.u32 %v176, 7
    %v178 = vsub.s32 %v175, %v177
    %v179 = vrot.slane %v165, %v178
    %v180 = vlaneseq
    %v181 = vshrl.u32 %v180, 7
    %v182 = vsub.s32 0, %v181
    %v183 = vrot.slane %v172, %v182
    %v184 = vlaneseq
    %v185 = vshrl.u32 %v184, 7
    %v186 = vsub.s32 0, %v185
    %v187 = vrot.slane %v179, %v186
    %v191 = vsel %vm83, %v65, 0
    %v194 = vsel %vm83, %v66, 0
    %196 = vmatprep.subr.mxu0 0.0
    %197 = vmatpush1.msra.mxu0 %v67
    %198 = vmatprep.subr.mxu0 0.0
    %199 = vmatpush1.msra.mxu0 %v68
    %200 = vmatprep.subr.mxu0 0.0
    %201 = vmatpush1.msra.mxu0 %v69
    %202 = vmatprep.subr.mxu0 0.0
    %203 = vmatpush1.msra.mxu0 %v70
    %204 = vmatprep.subr.mxu0 0.0
    %205 = vmatpush1.msra.mxu0 0.0
    %206 = vmatprep.subr.mxu0 0.0
    %207 = vmatpush1.msra.mxu0 0.0
    %208 = vmatprep.subr.mxu0 0.0
    %209 = vmatpush1.msra.mxu0 0.0
    %210 = vmatprep.subr.mxu0 0.0
    %211 = vmatpush1.msra.mxu0 0.0
    %212 = vmatprep.subr.mxu0 0.0
    %213 = vmatpush1.msra.mxu0 0.0
    %214 = vmatprep.subr.mxu0 0.0
    %215 = vmatpush1.msra.mxu0 0.0
    %216 = vmatprep.subr.mxu0 0.0
    %217 = vmatpush1.msra.mxu0 0.0
    %218 = vmatprep.subr.mxu0 0.0
    %219 = vmatpush1.msra.mxu0 0.0
    %220 = vmatprep.subr.mxu0 0.0
    %221 = vmatpush1.msra.mxu0 0.0
    %222 = vmatprep.subr.mxu0 0.0
    %223 = vmatpush1.msra.mxu0 0.0
    %224 = vmatprep.subr.mxu0 0.0
    %225 = vmatpush1.msra.mxu0 0.0
    %226 = vmatprep.subr.mxu0 0.0
    %227 = vmatpush1.msra.mxu0 0.0
    %228 = vmatprep.subr.mxu0 0.0
    %229 = vmatpush1.msra.mxu0 0.0
    %230 = vmatprep.subr.mxu0 0.0
    %231 = vmatpush1.msra.mxu0 0.0
    %232 = vmatprep.subr.mxu0 0.0
    %233 = vmatpush1.msra.mxu0 0.0
    %234 = vmatprep.subr.mxu0 0.0
    %235 = vmatpush1.msra.mxu0 0.0
    %236 = vmatprep.subr.mxu0 0.0
    %237 = vmatpush1.msra.mxu0 0.0
    %238 = vmatprep.subr.mxu0 0.0
    %239 = vmatpush1.msra.mxu0 0.0
    %240 = vmatprep.subr.mxu0 0.0
    %241 = vmatpush1.msra.mxu0 0.0
    %242 = vmatprep.subr.mxu0 0.0
    %243 = vmatpush1.msra.mxu0 0.0
    %244 = vmatprep.subr.mxu0 0.0
    %245 = vmatpush1.msra.mxu0 0.0
    %246 = vmatprep.subr.mxu0 0.0
    %247 = vmatpush1.msra.mxu0 0.0
    %248 = vmatprep.subr.mxu0 0.0
    %249 = vmatpush1.msra.mxu0 0.0
    %250 = vmatprep.subr.mxu0 0.0
    %251 = vmatpush1.msra.mxu0 0.0
    %252 = vmatprep.subr.mxu0 0.0
    %253 = vmatpush1.msra.mxu0 0.0
    %254 = vmatprep.subr.mxu0 0.0
    %255 = vmatpush1.msra.mxu0 0.0
    %256 = vmatprep.subr.mxu0 0.0
    %257 = vmatpush1.msra.mxu0 0.0
    %258 = vmatprep.subr.mxu0 0.0
    %259 = vmatpush1.msra.mxu0 0.0
    %260 = vmatprep.mubr.f32.mxu0 0.0
    %261 = vmatmul.mubr.f32.gmra.mrb[0].mxu0 %v191
    %v262 = vpop.f32.mrb[0].mxu0
    %v263 = vadd.f32 %v183, %v262
    %v264 = vpop.f32.mrb[0].mxu0
    %265 = vmatprep.mubr.f32.mxu0 0.0
    %266 = vmatmul.mubr.f32.gmra.mrb[0].mxu0 %v194
    %v267 = vpop.f32.mrb[0].mxu0
    %v268 = vadd.f32 %v187, %v267
    %v269 = vpop.f32.mrb[0].mxu0
    %270 = vdwg.mxu0
    %v271 = vtanh.pop %v263
    %v272 = vtanh.pop %v268
    %v273 = vld [vmem:[%s5] sm:$0x1]
    %v275 = vlaneseq
    %v276 = vshrl.u32 %v275, 7
    %v277 = vsub.s32 0, %v276
    %v278 = vrot.slane %v273, %v277
    %v280 = vmul.f32 %v271, %v278
    %v281 = vmul.f32 %v272, %v278
    %v282 = vsel %vm83, %v280, 0.0
    %283 = vadd.xlane.f32.xlu0 %v282
    %v284 = vpop.xlane.xlu0 %283
    %v285 = vsel %vm83, %v281, 0.0
    %286 = vadd.xlane.f32.xlu0 %v285
    %v287 = vpop.xlane.xlu0 %286
    %v290 = vlaneseq
    %v291 = vand.u32 %v290, 127
    %v292 = vlaneseq
    %v293 = vshrl.u32 %v292, 7
    %v294 = vsub.s32 %v291, %v293
    %v295 = vrot.slane %v284, %v294
    %v296 = vlaneseq
    %v297 = vshrl.u32 %v296, 7
    %v298 = vsub.s32 %v291, %v297
    %v299 = vrot.slane %v287, %v298
    %vm300 = vcmask 1041409
    %v301 = vsel %vm300, %v299, %v295
    %vm303 = vcmask 58368
    %v304 = vsel %vm303, %v301, -inf
    %305 = vmax.xlane.f32.xlu0 %v304
    %v306 = vpop.xlane.xlu0 %305
    %v308 = vlaneseq
    %v309 = vshrl.u32 %v308, 7
    %v310 = vsub.s32 0, %v309
    %v311 = vrot.slane %v306, %v310
    %v312 = vlaneseq
    %v313 = vshrl.u32 %v312, 7
    %v314 = vsub.s32 1, %v313
    %v315 = vrot.slane %v306, %v314
    %v318 = vsub.f32 %v284, %v311
    %v319 = vsub.f32 %v287, %v315
    %v320 = vmul.f32 %v318, 1.442695
    %v321 = vpow.pop %v320
    %v322 = vmul.f32 %v319, 1.442695
    %v323 = vpow.pop %v322
    %326 = vset.pattern.permute.xlu0 0
    %327 = vperm.xlu0 %326, %v321
    %v328 = vpop.permute.xlu0 %327
    %329 = vset.pattern.permute.xlu0 0
    %330 = vperm.xlu0 %329, %v323
    %v331 = vpop.permute.xlu0 %330
    %v332 = vlaneseq
    %v333 = vshrl.u32 %v332, 7
    %v334 = vsub.s32 %v291, %v333
    %v335 = vrot.slane %v328, %v334
    %v336 = vlaneseq
    %v337 = vshrl.u32 %v336, 7
    %v338 = vsub.s32 %v291, %v337
    %v339 = vrot.slane %v331, %v338
    %v340 = vsel %vm300, %v339, %v335
    %v342 = vsel %vm303, %v340, 0.0
    %343 = vadd.xlane.f32.xlu0 %v342
    %v344 = vpop.xlane.xlu0 %343
    %v346 = vlaneseq
    %v347 = vshrl.u32 %v346, 7
    %v348 = vsub.s32 0, %v347
    %v349 = vrot.slane %v344, %v348
    %v350 = vlaneseq
    %v351 = vshrl.u32 %v350, 7
    %v352 = vsub.s32 1, %v351
    %v353 = vrot.slane %v344, %v352
    %v356 = vrcp.pop %v349
    %v357 = vmul.f32 %v321, %v356
    %v358 = vrcp.pop %v353
    %v359 = vmul.f32 %v323, %v358
    %362 = vset.pattern.permute.xlu0 0
    %363 = vperm.xlu0 %362, %v357
    %v364 = vpop.permute.xlu0 %363
    %365 = vset.pattern.permute.xlu0 0
    %366 = vperm.xlu0 %365, %v359
    %v367 = vpop.permute.xlu0 %366
    %v368 = vlaneseq
    %v369 = vshrl.u32 %v368, 7
    %v370 = vsub.s32 %v291, %v369
    %v371 = vrot.slane %v364, %v370
    %v372 = vadd.s32 %v291, 4294967288
    %v373 = vlaneseq
    %v374 = vshrl.u32 %v373, 7
    %v375 = vsub.s32 %v372, %v374
    %v376 = vrot.slane %v367, %v375
    %vm377 = vcmask 130112
    %v378 = vsel %vm377, %v376, %v371
    %vm380 = vcmask 122880
    %381 = vst.msk [vmem:[#allocation8] sm:$0x1] %vm380, %v378
    // Predicated region
    $region38: #{tpu_custom_call.1} parent=1 // pred_check
      _
    $region39: #{tpu_custom_call.1} parent=1 // pred_check_branch
      %383 = sbr.rel (0) target = $region41
    $region40: #{tpu_custom_call.1} parent=1 // pred_region
      %s385 = ssub.s32 16, 16
      %386 = vsyncadd [#allocation4], %s385
      %s388 = sshll.u32 [#allocation8], 4
      %s389 = int_to_ptr.vmem [resolvable:$true] %s388
      %391 = dma.vmem_to_hbm [thread:$0]  %s389, 16, %s6, [#allocation4]
    $region41: #{tpu_custom_call.1} parent=1 // pred_fallthru
      _
    // Predicated region
    $region42: #{tpu_custom_call.1} parent=1 // pred_check
      _
    $region43: #{tpu_custom_call.1} parent=1 // pred_check_branch
      %393 = sbr.rel (0) target = $region45
    $region44: #{tpu_custom_call.1} parent=1 // pred_region
      %394 = dma.done [#allocation4], 16
    $region45: #{tpu_custom_call.1} parent=1 // pred_fallthru
      _
    %395 = vsyncpa [#allocation3], 1
    %396 = vsyncpa [#allocation6], 1
    %397 = vsyncpa [#allocation4], 1

</llo_original>
